<compile_context>
chip_gen: v7x
topology: tpu7x:2x2x1
jax: 0.10.0
libtpu: 0.0.40
codegen_flags: <defaults>
</compile_context>

<pallas_src>
import numpy as np
import jax
import jax.numpy as jnp
from jax import lax
from jax.experimental import pallas as pl
from jax.experimental.pallas import tpu as pltpu


def _round_up(n, m):
    return ((n + m - 1) // m) * m


# --------------------------------------------------------------------------------------
# Pallas kernel: one MXU matmul per (batch, lane-tile) grid step.
# --------------------------------------------------------------------------------------
def _ses_conv_1x1_kernel(x_ref, w_ref, o_ref):
    # x_ref: (1, S_pad*C_in, TP)   w_ref: (S*C_out, S_pad*C_in)   o_ref: (1, S*C_out, TP)
    o_ref[0] = jnp.dot(w_ref[...], x_ref[0],
                       preferred_element_type=jnp.float32).astype(o_ref.dtype)


# --------------------------------------------------------------------------------------
# Wrapper (glue: stride subsample, scale/lane padding, block-Toeplitz weight, layout)
# --------------------------------------------------------------------------------------
def ses_conv_h_h_1x1(x, weight, *, scale_size, stride=1):
    B, C_in, S, H, W = x.shape
    C_out = weight.shape[0]

    # spatial stride of a 1x1 conv == subsampling (wrapper-side glue)
    xs = x[:, :, :, ::stride, ::stride]
    Ho, Wo = xs.shape[3], xs.shape[4]
    HoWo = Ho * Wo
    S_pad = S + scale_size - 1

    # lane-dense padded spatial length P and lane tile TP (multiple of 128, <= 1024)
    TP = min(_round_up(HoWo, 128), 1024)
    P = _round_up(HoWo, TP)
    n_pt = P // TP

    # x -> [B, S_pad*C_in, P]  (scale axis zero-padded at the end, lanes zero-padded)
    xt = jnp.transpose(xs, (0, 2, 1, 3, 4)).reshape(B, S, C_in, HoWo)
    xt = jnp.pad(xt, ((0, 0), (0, scale_size - 1), (0, 0), (0, P - HoWo)))
    xm = xt.reshape(B, S_pad * C_in, P).astype(jnp.bfloat16)

    # block-Toeplitz weight [S*C_out, S_pad*C_in]
    w3 = weight.reshape(C_out, C_in, scale_size).astype(jnp.float32)   # [O, C, J]
    wt = jnp.transpose(w3, (0, 2, 1))                                  # [O, J, C]
    wbig = jnp.zeros((S, C_out, S_pad, C_in), jnp.float32)
    for s in range(S):
        wbig = wbig.at[s, :, s:s + scale_size, :].set(wt)
    wbig = wbig.reshape(S * C_out, S_pad * C_in).astype(jnp.bfloat16)

    R_in = S_pad * C_in
    R_out = S * C_out

    cost = pl.CostEstimate(
        flops=2 * B * R_out * R_in * P,
        transcendentals=0,
        bytes_accessed=(xm.size * 2 + wbig.size * 2
                        + B * R_out * P * x.dtype.itemsize))

    out = pl.pallas_call(
        _ses_conv_1x1_kernel,
        out_shape=jax.ShapeDtypeStruct((B, R_out, P), x.dtype),
        grid_spec=pltpu.PrefetchScalarGridSpec(
            num_scalar_prefetch=0,
            grid=(B, n_pt),
            in_specs=[
                pl.BlockSpec((1, R_in, TP), lambda b, pt: (b, 0, pt)),
                pl.BlockSpec((R_out, R_in), lambda b, pt: (0, 0)),
            ],
            out_specs=pl.BlockSpec((1, R_out, TP), lambda b, pt: (b, 0, pt)),
        ),
        compiler_params=pltpu.CompilerParams(
            dimension_semantics=("parallel", "parallel")),
        cost_estimate=cost,
    )(xm, wbig)

    # [B, S*C_out, P] -> [B, C_out, S, Ho, Wo]  (PyTorch output layout)
    out = out[:, :, :HoWo].reshape(B, S, C_out, Ho, Wo)
    return jnp.transpose(out, (0, 2, 1, 3, 4))


# --------------------------------------------------------------------------------------
# Pure-JAX reference mirroring the PyTorch forward (conv3d + scale-axis slice)
# --------------------------------------------------------------------------------------
def ses_conv_1x1_reference(x, weight, *, scale_size, stride=1):
    pad = scale_size - 1
    xp = x
    if pad > 0:
        xp = jnp.pad(x, ((0, 0), (0, 0), (pad, pad), (0, 0), (0, 0)))
    out = lax.conv_general_dilated(
        xp, weight, window_strides=(1, stride, stride), padding='VALID',
        dimension_numbers=('NCDHW', 'OIDHW', 'NCDHW'))
    return out[:, :, pad:]


# --------------------------------------------------------------------------------------
if __name__ == "__main__":
    B, C_in, C_out = 2, 4, 8
    S = 3                 # num_scales
    scale_size = 2
    H = W = 16

    key = jax.random.PRNGKey(0)
    kx, kw = jax.random.split(key)
    x = jax.random.normal(kx, (B, C_in, S, H, W), dtype=jnp.float32)

    # kaiming_uniform_(a=sqrt(5)) on weight [C_out, C_in, scale_size, 1, 1]
    fan_in = C_in * scale_size
    bound = 1.0 / float(np.sqrt(fan_in))
    weight = jax.random.uniform(kw, (C_out, C_in, scale_size, 1, 1),
                                dtype=jnp.float32, minval=-bound, maxval=bound)

    for stride in (1, 2):
        out = ses_conv_h_h_1x1(x, weight, scale_size=scale_size, stride=stride)
        out = jax.block_until_ready(out)

        ref = ses_conv_1x1_reference(x, weight, scale_size=scale_size, stride=stride)
        Ho = (H - 1) // stride + 1
        assert out.shape == ref.shape == (B, C_out, S, Ho, Ho), (out.shape, ref.shape)
        # bf16 MXU inputs with f32 accumulation -> relaxed tolerance
        np.testing.assert_allclose(np.asarray(out), np.asarray(ref),
                                   rtol=2e-2, atol=2e-2)

    print("KERNEL_OK")
</pallas_src>

<mosaic_0001>
module attributes {stable_mosaic.version = 11 : i64} {
  func.func @_ses_conv_1x1_kernel(%arg0: i32, %arg1: i32, %arg2: memref<1x16x256xbf16, #tpu.memory_space<vmem>>, %arg3: memref<24x16xbf16, #tpu.memory_space<vmem>>, %arg4: memref<1x24x256xf32, #tpu.memory_space<vmem>>) attributes {dimension_semantics = [#tpu.dimension_semantics<parallel>, #tpu.dimension_semantics<parallel>], iteration_bounds = array<i64: 2, 1>, scalar_prefetch = 0 : i64, scratch_operands = 0 : i64, tpu.core_type = #tpu.core_type<tc>, window_params = [{transform_indices = @transform_0, window_bounds = array<i64: 1, 16, 256>}, {pipeline_mode = #tpu.pipeline_mode<synchronous>, transform_indices = @transform_1, window_bounds = array<i64: 24, 16>}, {transform_indices = @transform_2, window_bounds = array<i64: 1, 24, 256>}]} {
    %c0 = arith.constant 0 : index
    %c0_0 = arith.constant 0 : index
    %0 = vector.load %arg3[%c0, %c0_0] : memref<24x16xbf16, #tpu.memory_space<vmem>>, vector<24x16xbf16>
    %c0_1 = arith.constant 0 : index
    %c0_2 = arith.constant 0 : index
    %c0_3 = arith.constant 0 : index
    %1 = vector.load %arg2[%c0_1, %c0_2, %c0_3] : memref<1x16x256xbf16, #tpu.memory_space<vmem>>, vector<1x16x256xbf16>
    %2 = vector.shape_cast %1 : vector<1x16x256xbf16> to vector<16x256xbf16>
    %cst = arith.constant dense<0.000000e+00> : vector<24x256xf32>
    %3 = tpu.matmul %0, %2, %cst {dimension_numbers = #tpu.dot_dimension_numbers<[1], [0], [0], [1], [0, 0, 1, 1], [], []>} : vector<24x16xbf16>, vector<16x256xbf16>, vector<24x256xf32> -> vector<24x256xf32>
    %c0_4 = arith.constant 0 : index
    %c0_5 = arith.constant 0 : index
    %c0_6 = arith.constant 0 : index
    %4 = vector.load %arg4[%c0_4, %c0_5, %c0_6] : memref<1x24x256xf32, #tpu.memory_space<vmem>>, vector<1x24x256xf32>
    %5 = vector.shape_cast %4 : vector<1x24x256xf32> to vector<24x256xf32>
    %6 = vector.shape_cast %3 : vector<24x256xf32> to vector<1x24x256xf32>
    tpu.vector_store %arg4[%c0_4, %c0_5, %c0_6], %6 {strides = array<i32>} : memref<1x24x256xf32, #tpu.memory_space<vmem>>, vector<1x24x256xf32>,
    return
  }
  func.func @transform_0(%arg0: i32, %arg1: i32) -> (i32, i32, i32) {
    %c0_i32 = arith.constant 0 : i32
    %c0_i32_0 = arith.constant 0 : i32
    return %arg0, %c0_i32, %arg1 : i32, i32, i32
  }
  func.func @transform_1(%arg0: i32, %arg1: i32) -> (i32, i32) {
    %c0_i32 = arith.constant 0 : i32
    %c0_i32_0 = arith.constant 0 : i32
    %c0_i32_1 = arith.constant 0 : i32
    return %c0_i32, %c0_i32_0 : i32, i32
  }
  func.func @transform_2(%arg0: i32, %arg1: i32) -> (i32, i32, i32) {
    %c0_i32 = arith.constant 0 : i32
    %c0_i32_0 = arith.constant 0 : i32
    return %arg0, %c0_i32, %arg1 : i32, i32, i32
  }
}

</mosaic_0001>

<llo_original>
// kernel: tpu_custom_call.1
$region0: #{tpu_custom_call.1}
  #allocation0 [shape = 'u32[]', space=smem, size = 0x4, offset = 0x4, fixed_abs, tag = 'smem constant byte address 0x4 - core index']
  #allocation1 [shape = 'u32[144,128]{1,0:T(1,128)}', space=vmem, size = 0x12000, scoped, tag = 'internal scratch']
  %s0 = inlined_call_operand.hbm [shape: bf16[2,16,256], index: 0, kind: input, shape index: {}]
  %s1 = inlined_call_operand.vmem [shape: bf16[24,16], index: 1, kind: input, shape index: {}]
  %s2 = inlined_call_operand.hbm [shape: f32[2,24,256], index: 2, kind: output, shape index: {}]
  %s3 = sld [smem:[#allocation0]]
  $region45: #{tpu_custom_call.1} parent=0
    _
  %s5 = ssub.s32 1, %s3
  %s6 = scalar_select 0, %s5, %s3
  $region1: #{tpu_custom_call.1} parent=0
    #allocation2 [shape = 'u8[16384]{0}', space=vmem, size = 0x4000, scoped, tag = 'input window, operand 0']
    #allocation3 [shape = 's32[2]{0}', space=sflag, size = 0x8, scoped, tag = 'scoped memory for tpu_custom_call.1']
    #allocation4 [shape = 's32[2]{0}', space=sflag, size = 0x8, scoped, tag = 'scoped memory for tpu_custom_call.1']
    #allocation5 [shape = 'u8[49152]{0}', space=vmem, size = 0xc000, scoped, tag = 'output window, operand 0']
    %7 = vsyncpa [#allocation3], 0
    %s8 = scalar_lea.sflag [#allocation3], 1
    %9 = vsyncpa %s8, 0
    %10 = vsyncpa [#allocation4], 0
    %s11 = scalar_lea.sflag [#allocation4], 1
    %12 = vsyncpa %s11, 0
    loop: start=0, step=1, limit=4
    $region2: #{tpu_custom_call.1} parent=1 // loop_pre_header
      _
    $region3: #{tpu_custom_call.1} parent=1 // loop_header
      %s14 = sphi 0, %s18
      %p15 = scmp.ge.s32.totalorder %s14, 4
      %s21 = sphi 0, %s33
      %s22 = sphi 0, %s29
      %s23 = sphi 0, %s21
      %s24 = sphi 0, %s22
      %s25 = sphi 0, %s23
      %s26 = sphi 0, %s24
      %s38 = sphi 0, %s40
      %s41 = sphi 0, %s38
      %s42 = sphi 0, %s41
      %s58 = sphi 0, %s42
      %s62 = sphi 0, %s62
      %s64 = sphi 0, %s62
      %s65 = sphi 0, %s64
      %s79 = sphi 0, %s65
      %s87 = sphi 0, %s89
      %s90 = sphi 0, %s87
      %s91 = sphi 0, %s90
      %s107 = sphi 0, %s91
    $region4: #{tpu_custom_call.1} parent=1 // loop_header_branch
      %17 = sbr.rel (%p15) target = $region8
    $region5: #{tpu_custom_call.1} parent=1 // loop_body
      %s19 = ssub.s32 %s14, 1
      %s20 = ssub.s32 %s14, 2
      %s27 = sadd.s32 1, %s22
      %p28 = scmp.ge.s32.totalorder %s27, 1
      %s29 = scalar_select %p28, 0, %s27
      %s30 = sadd.s32 1, %s21
      %s31 = scalar_select %p28, %s30, %s21
      %p32 = scmp.ge.s32.totalorder %s31, 2
      %s33 = scalar_select %p32, 0, %s31
      %s34 = ssub.s32 %s21, %s33
      %s35 = ssub.s32 %s22, %s29
      %s36 = sor.u32 %s34, %s35
      %p37 = scmp.eq.s32.totalorder %s36, 0
      %s39 = sadd.s32 %s38, 1
      %s40 = scalar_select %p37, %s38, %s39
      %p43 = pneg %p37
      %p44 = scmp.eq.s32.totalorder %s14, 1
      %p45 = por %p43, %p44
      %p46 = scmp.ne.s32.totalorder %s38, %s41
      %p47 = scmp.eq.s32.totalorder %s14, 0
      %p48 = por %p46, %p47
      %p49 = scmp.ne.s32.totalorder %s38, %s41
      %p50 = scmp.eq.s32.totalorder %s19, 1
      %p51 = por %p49, %p50
      %p52 = scmp.ne.s32.totalorder %s41, %s42
      %p53 = scmp.eq.s32.totalorder %s19, 0
      %p54 = por %p52, %p53
      %p55 = scmp.ne.s32.totalorder %s41, %s42
      %p56 = scmp.eq.s32.totalorder %s20, 1
      %p57 = por %p55, %p56
      %p59 = scmp.ne.s32.totalorder %s42, %s58
      %p60 = scmp.eq.s32.totalorder %s20, 0
      %p61 = por %p59, %p60
      %s63 = sadd.s32 %s62, 1
      %p66 = scmp.eq.s32.totalorder %s14, 1
      %p67 = scmp.ne.s32.totalorder %s62, %s64
      %p68 = scmp.eq.s32.totalorder %s14, 0
      %p69 = por %p67, %p68
      %p70 = scmp.ne.s32.totalorder %s62, %s64
      %p71 = scmp.eq.s32.totalorder %s19, 1
      %p72 = por %p70, %p71
      %p73 = scmp.ne.s32.totalorder %s64, %s65
      %p74 = scmp.eq.s32.totalorder %s19, 0
      %p75 = por %p73, %p74
      %p76 = scmp.ne.s32.totalorder %s64, %s65
      %p77 = scmp.eq.s32.totalorder %s20, 1
      %p78 = por %p76, %p77
      %p80 = scmp.ne.s32.totalorder %s65, %s79
      %p81 = scmp.eq.s32.totalorder %s20, 0
      %p82 = por %p80, %p81
      %s83 = ssub.s32 %s21, %s33
      %s84 = ssub.s32 %s22, %s29
      %s85 = sor.u32 %s83, %s84
      %p86 = scmp.eq.s32.totalorder %s85, 0
      %s88 = sadd.s32 %s87, 1
      %s89 = scalar_select %p86, %s87, %s88
      %p92 = pneg %p86
      %p93 = scmp.eq.s32.totalorder %s14, 1
      %p94 = por %p92, %p93
      %p95 = scmp.ne.s32.totalorder %s87, %s90
      %p96 = scmp.eq.s32.totalorder %s14, 0
      %p97 = por %p95, %p96
      %p98 = scmp.ne.s32.totalorder %s87, %s90
      %p99 = scmp.eq.s32.totalorder %s19, 1
      %p100 = por %p98, %p99
      %p101 = scmp.ne.s32.totalorder %s90, %s91
      %p102 = scmp.eq.s32.totalorder %s19, 0
      %p103 = por %p101, %p102
      %p104 = scmp.ne.s32.totalorder %s90, %s91
      %p105 = scmp.eq.s32.totalorder %s20, 1
      %p106 = por %p104, %p105
      %p108 = scmp.ne.s32.totalorder %s91, %s107
      %p109 = scmp.eq.s32.totalorder %s20, 0
      %p110 = por %p108, %p109
      %p111 = scmp.le.s32.totalorder 1, %s14
      %p112 = scmp.lt.s32.totalorder %s14, 3
      %p113 = pnand %p111, %p112
      %p114 = pneg %p113
      // Predicated region
      $region9: #{tpu_custom_call.1} parent=5 // pred_check
        _
      $region10: #{tpu_custom_call.1} parent=5 // pred_check_branch
        %116 = sbr.rel (%p113) target = $region12
      $region11: #{tpu_custom_call.1} parent=5 // pred_region
        %s117 = ssub.s32 %s14, 1
        // Predicated region
        $region13: #{tpu_custom_call.1} parent=11 // pred_check
          %p118 = pneg %p75
        $region14: #{tpu_custom_call.1} parent=11 // pred_check_branch
          %120 = sbr.rel (%p118) target = $region16
        $region15: #{tpu_custom_call.1} parent=11 // pred_region
          _
        $region16: #{tpu_custom_call.1} parent=11 // pred_fallthru
          _
      $region12: #{tpu_custom_call.1} parent=5 // pred_fallthru
        _
      %p121 = scmp.lt.s32.totalorder %s14, 2
      // Predicated region
      $region17: #{tpu_custom_call.1} parent=5 // pred_check
        %p122 = pneg %p121
      $region18: #{tpu_custom_call.1} parent=5 // pred_check_branch
        %124 = sbr.rel (%p122) target = $region20
      $region19: #{tpu_custom_call.1} parent=5 // pred_region
        // Predicated region
        $region21: #{tpu_custom_call.1} parent=19 // pred_check
          %p125 = pneg %p48
        $region22: #{tpu_custom_call.1} parent=19 // pred_check_branch
          %127 = sbr.rel (%p125) target = $region24
        $region23: #{tpu_custom_call.1} parent=19 // pred_region
          %s128 = sand.u32 %s38, 1
          %s129 = scalar_lea.sflag [#allocation3], %s128
          %s130 = sand.u32 %s38, 1
          %s131 = smul.addr %s130, 16
          %s132 = scalar_lea.vmem [#allocation2], %s131
          %s133 = smul.u32 2, %s22
          %s135 = ssub.s32 256, 256
          %136 = vsyncadd %s129, %s135
          %s137 = smul.addr %s21, 4
          %s138 = sadd.s32 %s133, %s137
          %s139 = smul.addr %s138, 64
          %s140 = scalar_lea.hbm %s0, %s139
          %s141 = sshll.u32 %s132, 4
          %s142 = int_to_ptr.vmem [resolvable:$true] %s141
          %147 = dma.hbm_to_vmem [thread:$0]  %s140, 256, %s142, %s129, 128, 128, 8
        $region24: #{tpu_custom_call.1} parent=19 // pred_fallthru
          _
      $region20: #{tpu_custom_call.1} parent=5 // pred_fallthru
        _
      %p148 = scmp.le.s32.totalorder 1, %s14
      %p149 = scmp.lt.s32.totalorder %s14, 3
      %p150 = pnand %p148, %p149
      %p151 = pneg %p150
      // Predicated region
      $region25: #{tpu_custom_call.1} parent=5 // pred_check
        _
      $region26: #{tpu_custom_call.1} parent=5 // pred_check_branch
        %153 = sbr.rel (%p150) target = $region28
      $region27: #{tpu_custom_call.1} parent=5 // pred_region
        %s154 = ssub.s32 %s14, 1
        %s155 = sand.u32 %s41, 1
        %s156 = scalar_lea.sflag [#allocation3], %s155
        %s157 = sand.u32 %s41, 1
        %s158 = smul.addr %s157, 16
        %s159 = scalar_lea.vmem [#allocation2], %s158
        // Predicated region
        $region29: #{tpu_custom_call.1} parent=27 // pred_check
          %p160 = pneg %p54
        $region30: #{tpu_custom_call.1} parent=27 // pred_check_branch
          %162 = sbr.rel (%p160) target = $region32
        $region31: #{tpu_custom_call.1} parent=27 // pred_region
          %163 = dma.done %s156, 256
        $region32: #{tpu_custom_call.1} parent=27 // pred_fallthru
          _
        %s164 = sand.u32 %s41, 1
        %s165 = scalar_lea.sflag [#allocation3], %s164
        %s166 = sand.u32 %s41, 1
        %s167 = smul.addr %s166, 16
        %s168 = scalar_lea.vmem [#allocation2], %s167
        %p169 = pneg %p54
        %p170 = pneg %p51
        %p171 = pneg %p75
        %p172 = pneg %p72
        %p173 = pneg %p103
        %p174 = pneg %p100
        %s175 = sand.u32 %s90, 1
        %s176 = scalar_lea.sflag [#allocation4], %s175
        %s177 = sand.u32 %s90, 1
        %s178 = smul.addr %s177, 48
        %s179 = scalar_lea.vmem [#allocation5], %s178
        %s180 = smul.u32 2, %s24
        %s181 = smul.u32 2, %s24
        %v183 = vld [vmem:[%s1] sm:$0xf]
        %v184 = vld [vmem:[%s1 + $0x4] sm:$0xf]
        %v185 = vld [vmem:[%s1 + $0x8] sm:$0xf]
        %v186 = vld [vmem:[%s159] sm:$0xff]
        %v187 = vld [vmem:[%s159 + $0x8] sm:$0xff]
        %v191 = vunpack.c.l.b16 %v183
        %v192 = vunpack.c.l.b16 %v184
        %v193 = vunpack.c.l.b16 %v185
        %v194 = vpack.c.b16 %v192, %v191
        %v195 = vpack.c.b16 %v193, %v193
        %v198 = vunpack.c.l.b16 %v186
        %v199 = vunpack.c.h.b16 %v186
        %v200 = vunpack.c.l.b16 %v187
        %v201 = vunpack.c.h.b16 %v187
        %v202 = vpack.c.b16 %v200, %v198
        %v203 = vpack.c.b16 %v201, %v199
        %vm206 = vcmask 130048
        %v208 = vsel %vm206, %v194, 0
        %v211 = vsel %vm206, %v195, 0
        %213 = vmatprep.subr.bf16.mxu0 %v203
        %214 = vmatpush1.bf16.msra.mxu0 %v202
        %215 = vmatprep.subr.bf16.mxu0 0
        %216 = vmatpush1.bf16.msra.mxu0 0
        %217 = vmatprep.subr.bf16.mxu0 0
        %218 = vmatpush1.bf16.msra.mxu0 0
        %219 = vmatprep.subr.bf16.mxu0 0
        %220 = vmatpush1.bf16.msra.mxu0 0
        %221 = vmatprep.subr.bf16.mxu0 0
        %222 = vmatpush1.bf16.msra.mxu0 0
        %223 = vmatprep.subr.bf16.mxu0 0
        %224 = vmatpush1.bf16.msra.mxu0 0
        %225 = vmatprep.subr.bf16.mxu0 0
        %226 = vmatpush1.bf16.msra.mxu0 0
        %227 = vmatprep.subr.bf16.mxu0 0
        %228 = vmatpush1.bf16.msra.mxu0 0
        %229 = vmatprep.subr.bf16.mxu0 0
        %230 = vmatpush1.bf16.msra.mxu0 0
        %231 = vmatprep.subr.bf16.mxu0 0
        %232 = vmatpush1.bf16.msra.mxu0 0
        %233 = vmatprep.subr.bf16.mxu0 0
        %234 = vmatpush1.bf16.msra.mxu0 0
        %235 = vmatprep.subr.bf16.mxu0 0
        %236 = vmatpush1.bf16.msra.mxu0 0
        %237 = vmatprep.subr.bf16.mxu0 0
        %238 = vmatpush1.bf16.msra.mxu0 0
        %239 = vmatprep.subr.bf16.mxu0 0
        %240 = vmatpush1.bf16.msra.mxu0 0
        %241 = vmatprep.subr.bf16.mxu0 0
        %242 = vmatpush1.bf16.msra.mxu0 0
        %243 = vmatprep.subr.bf16.mxu0 0
        %244 = vmatpush1.bf16.msra.mxu0 0
        %245 = vmatprep.mubr.bf16.mxu0 0
        %246 = vmatmul.mubr.bf16.gmra.mrb[0].mxu0 %v208
        %v247 = vpop.f32.mrb[0].mxu0
        %v248 = vadd.f32 0.0, %v247
        %v249 = vpop.f32.mrb[0].mxu0
        %v250 = vadd.f32 0.0, %v249
        %v251 = vpop.f32.mrb[0].mxu0
        %v252 = vadd.f32 0.0, %v251
        %v253 = vpop.f32.mrb[0].mxu0
        %v254 = vadd.f32 0.0, %v253
        %255 = vmatprep.mubr.bf16.mxu0 0
        %256 = vmatmul.mubr.bf16.gmra.mrb[0].mxu0 %v211
        %v257 = vpop.f32.mrb[0].mxu0
        %v258 = vadd.f32 0.0, %v257
        %v259 = vpop.f32.mrb[0].mxu0
        %v260 = vadd.f32 0.0, %v259
        %v261 = vpop.f32.mrb[0].mxu0
        %v262 = vpop.f32.mrb[0].mxu0
        %263 = vdwg.mxu0
        %264 = vst [vmem:[%s179] sm:$0xff] %v248
        %265 = vst [vmem:[%s179 + $0x8] sm:$0xff] %v250
        %266 = vst [vmem:[%s179 + $0x10] sm:$0xff] %v252
        %267 = vst [vmem:[%s179 + $0x18] sm:$0xff] %v254
        %268 = vst [vmem:[%s179 + $0x20] sm:$0xff] %v258
        %269 = vst [vmem:[%s179 + $0x28] sm:$0xff] %v260
        %s270 = sand.u32 %s90, 1
        %s271 = scalar_lea.sflag [#allocation4], %s270
        %s272 = sand.u32 %s90, 1
        %s273 = smul.addr %s272, 48
        %s274 = scalar_lea.vmem [#allocation5], %s273
        // Predicated region
        $region33: #{tpu_custom_call.1} parent=27 // pred_check
          %p275 = pneg %p100
        $region34: #{tpu_custom_call.1} parent=27 // pred_check_branch
          %277 = sbr.rel (%p275) target = $region36
        $region35: #{tpu_custom_call.1} parent=27 // pred_region
          %s278 = smul.u32 2, %s24
          %s280 = ssub.s32 768, 768
          %281 = vsyncadd %s271, %s280
          %s282 = smul.addr %s23, 6
          %s283 = sadd.s32 %s278, %s282
          %s284 = smul.addr %s283, 128
          %s285 = scalar_lea.hbm %s2, %s284
          %s286 = sshll.u32 %s274, 4
          %s287 = int_to_ptr.vmem [resolvable:$true] %s286
          %292 = dma.vmem_to_hbm [thread:$0]  %s287, 768, %s285, %s271, 256, 256, 16
        $region36: #{tpu_custom_call.1} parent=27 // pred_fallthru
          _
      $region28: #{tpu_custom_call.1} parent=5 // pred_fallthru
        _
      %p293 = scmp.le.s32.totalorder 2, %s14
      // Predicated region
      $region37: #{tpu_custom_call.1} parent=5 // pred_check
        %p294 = pneg %p293
      $region38: #{tpu_custom_call.1} parent=5 // pred_check_branch
        %296 = sbr.rel (%p294) target = $region40
      $region39: #{tpu_custom_call.1} parent=5 // pred_region
        %s297 = ssub.s32 %s14, 2
        // Predicated region
        $region41: #{tpu_custom_call.1} parent=39 // pred_check
          %p298 = pneg %p106
        $region42: #{tpu_custom_call.1} parent=39 // pred_check_branch
          %300 = sbr.rel (%p298) target = $region44
        $region43: #{tpu_custom_call.1} parent=39 // pred_region
          %s301 = sand.u32 %s91, 1
          %s302 = scalar_lea.sflag [#allocation4], %s301
          %s303 = sand.u32 %s91, 1
          %s304 = smul.addr %s303, 48
          %s305 = scalar_lea.vmem [#allocation5], %s304
          %306 = dma.done %s302, 768
        $region44: #{tpu_custom_call.1} parent=39 // pred_fallthru
          _
      $region40: #{tpu_custom_call.1} parent=5 // pred_fallthru
        _
    $region6: #{tpu_custom_call.1} parent=1 // loop_footer
      %s18 = sadd.s32 1, %s14
    $region7: #{tpu_custom_call.1} parent=1 // loop_footer_branch
      %13 = sbr.rel target = $region3
    $region8: #{tpu_custom_call.1} parent=1 // loop_exit
      _
    %307 = vsyncpa [#allocation3], 1
    %s308 = scalar_lea.sflag [#allocation3], 1
    %309 = vsyncpa %s308, 1
    %310 = vsyncpa [#allocation4], 1
    %s311 = scalar_lea.sflag [#allocation4], 1
    %312 = vsyncpa %s311, 1

</llo_original>
